<compile_context>
chip_gen: v6e
topology: v6e:2x2x1
jax: 0.10.0
libtpu: 0.0.40
codegen_flags: <defaults>
</compile_context>

<pallas_src>
import functools
import math

import jax
import jax.numpy as jnp
import numpy as np
from jax.experimental import pallas as pl
from jax.experimental.pallas import tpu as pltpu


# ---------------------------------------------------------------------------
# Small helpers
# ---------------------------------------------------------------------------
def _cdiv(a, b):
    return -(-a // b)


def _round_up(a, b):
    return _cdiv(a, b) * b


def _budgets(itemsize):
    """Generation- and dtype-aware (vmem_limit_bytes, target block bytes)."""
    try:
        vmem_cap = pltpu.get_tpu_info().vmem_capacity_bytes
    except Exception:
        vmem_cap = 64 * 1024 * 1024          # conservative (v7x-sized) fallback
    vmem_limit = min(int(vmem_cap * 3 // 4), 100 * 1024 * 1024)
    # Working set per grid step: 2x double-buffered input + 2x output blocks in
    # the native dtype, plus ~3 f32-sized temporaries of the tile (the kernel
    # upcasts to f32), plus headroom for compiler scratch / spills.
    f32_blowup = max(1, 4 // itemsize)       # 1 for f32, 2 for bf16, 4 for int8
    denom = 4 + 3 * f32_blowup
    block_bytes = max(2 * 1024 * 1024,
                      min(16 * 1024 * 1024, vmem_limit // denom))
    return vmem_limit, block_bytes


def _row_tile(rows, width, itemsize, block_bytes, granule, min_steps=4):
    """Row-tile size: ~block_bytes per block, granule-aligned, >=min_steps steps."""
    tm = max(granule, (block_bytes // max(1, width * itemsize)) // granule * granule)
    if rows >= min_steps * granule:
        # Cap so the grid keeps >=min_steps steps: pipelining + v7x megacore.
        tm = min(tm, max(granule, _round_up(_cdiv(rows, min_steps), granule)))
    if tm >= rows:
        tm = rows                             # single full-extent block is legal
    return tm


# ---------------------------------------------------------------------------
# channels_last, C a multiple of 128 (or tiny remainder cleanup): plain rows.
# ---------------------------------------------------------------------------
def _ln_rows_kernel(x_ref, w_ref, b_ref, o_ref, *, eps):
    x = x_ref[...].astype(jnp.float32)                 # (tm, c)
    mean = jnp.mean(x, axis=-1, keepdims=True)
    xc = x - mean
    var = jnp.mean(xc * xc, axis=-1, keepdims=True)
    inv = jax.lax.rsqrt(var + eps)                     # (tm, 1)
    w = w_ref[...].astype(jnp.float32)                 # (1, c)
    b = b_ref[...].astype(jnp.float32)                 # (1, c)
    o_ref[...] = (xc * (inv * w) + b).astype(o_ref.dtype)


def _ln_rows_call(x2d, weight, bias, eps):
    m, c = x2d.shape
    itemsize = x2d.dtype.itemsize
    vmem_limit, block_bytes = _budgets(itemsize)
    granule = 8 * max(1, 4 // itemsize)                # dtype sublane tile
    tm = _row_tile(m, c, itemsize, block_bytes, granule)

    w2 = weight.reshape(1, c)
    b2 = bias.reshape(1, c)

    return pl.pallas_call(
        functools.partial(_ln_rows_kernel, eps=eps),
        out_shape=jax.ShapeDtypeStruct((m, c), x2d.dtype),
        grid_spec=pltpu.PrefetchScalarGridSpec(
            num_scalar_prefetch=0,
            grid=(pl.cdiv(m, tm),),          # partial edge block handled by masking
            in_specs=[
                pl.BlockSpec((tm, c), lambda i: (i, 0)),
                pl.BlockSpec((1, c), lambda i: (0, 0)),
                pl.BlockSpec((1, c), lambda i: (0, 0)),
            ],
            out_specs=pl.BlockSpec((tm, c), lambda i: (i, 0)),
        ),
        compiler_params=pltpu.CompilerParams(
            dimension_semantics=("parallel",),
            vmem_limit_bytes=vmem_limit,
        ),
        cost_estimate=pl.CostEstimate(
            flops=8 * m * c,
            transcendentals=m,
            bytes_accessed=2 * m * c * itemsize,
        ),
    )(x2d, w2, b2)


# ---------------------------------------------------------------------------
# channels_last, C NOT a multiple of 128: pack k rows per lane-row so the
# packed width k*C is lane dense; per-row stats via 0/1 segment matrices on
# the otherwise idle MXU (no in-kernel relayouts).
# ---------------------------------------------------------------------------
def _ln_rows_packed_kernel(x_ref, s_ref, st_ref, stw_ref, b_ref, o_ref,
                           *, eps, inv_c):
    x = x_ref[...].astype(jnp.float32)                 # (tm, kc)
    S = s_ref[...]                                     # (kc, 128)  0/1
    St = st_ref[...]                                   # (128, kc)  0/1
    St_w = stw_ref[...]                                # (128, kc)  S^T * weight
    b = b_ref[...]                                     # (1, kc)    bias (tiled)

    hi = jax.lax.Precision.HIGHEST                     # keep f32 stats exact

    gsum = jnp.dot(x, S, preferred_element_type=jnp.float32, precision=hi)
    mean_b = jnp.dot(gsum * inv_c, St,
                     preferred_element_type=jnp.float32, precision=hi)
    xc = x - mean_b
    vsum = jnp.dot(xc * xc, S, preferred_element_type=jnp.float32, precision=hi)
    inv = jax.lax.rsqrt(vsum * inv_c + eps)            # (tm, 128)
    scale_b = jnp.dot(inv, St_w,
                      preferred_element_type=jnp.float32, precision=hi)
    o_ref[...] = (xc * scale_b + b).astype(o_ref.dtype)


def _ln_rows_packed_call(x2d, weight, bias, eps, k):
    m, c = x2d.shape                                   # m % k == 0 (guaranteed)
    kc = k * c
    mr = m // k
    xr = x2d.reshape(mr, kc)                           # contiguous -> free reshape
    itemsize = x2d.dtype.itemsize
    vmem_limit, block_bytes = _budgets(itemsize)
    granule = 8 * max(1, 4 // itemsize)
    tm = _row_tile(mr, kc, itemsize, block_bytes, granule)

    # Segment matrices built once here (tiny constants), passed with a constant
    # index_map so they stay resident in VMEM across grid steps.
    lane = np.arange(kc)
    s_np = (lane[:, None] // c == np.arange(128)[None, :]).astype(np.float32)
    S = jnp.asarray(s_np)                              # (kc, 128)
    St = jnp.asarray(s_np.T)                           # (128, kc)
    w_row = jnp.tile(weight.reshape(1, c).astype(jnp.float32), (1, k))
    b_row = jnp.tile(bias.reshape(1, c).astype(jnp.float32), (1, k))
    St_w = St * w_row                                  # fold affine scale

    out = pl.pallas_call(
        functools.partial(_ln_rows_packed_kernel, eps=eps, inv_c=1.0 / c),
        out_shape=jax.ShapeDtypeStruct((mr, kc), x2d.dtype),
        grid_spec=pltpu.PrefetchScalarGridSpec(
            num_scalar_prefetch=0,
            grid=(pl.cdiv(mr, tm),),         # masked partial edge block is safe
            in_specs=[
                pl.BlockSpec((tm, kc), lambda i: (i, 0)),
                pl.BlockSpec((kc, 128), lambda i: (0, 0)),
                pl.BlockSpec((128, kc), lambda i: (0, 0)),
                pl.BlockSpec((128, kc), lambda i: (0, 0)),
                pl.BlockSpec((1, kc), lambda i: (0, 0)),
            ],
            out_specs=pl.BlockSpec((tm, kc), lambda i: (i, 0)),
        ),
        compiler_params=pltpu.CompilerParams(
            dimension_semantics=("parallel",),
            vmem_limit_bytes=vmem_limit,
        ),
        cost_estimate=pl.CostEstimate(
            flops=8 * m * c + 4 * 2 * mr * kc * 128,   # elementwise + 4 MXU dots
            transcendentals=m,
            bytes_accessed=2 * m * c * itemsize,
        ),
    )(xr, S, St, St_w, b_row)
    return out.reshape(m, c)


def _pack_factor(c):
    """Rows packed per lane-row so the packed width k*c is a multiple of 128."""
    if c % 128 == 0:
        return 1
    k = 128 // math.gcd(c, 128)            # smallest k with (k*c) % 128 == 0
    if k > 1 and k * c <= 1024:
        return k
    return 1


def _layer_norm_rows(x2d, weight, bias, eps):
    """LayerNorm over the last dim of a (M, C) array."""
    m, c = x2d.shape
    k = _pack_factor(c)
    if k == 1:
        return _ln_rows_call(x2d, weight, bias, eps)

    # Packed main body + tiny (<= k-1 rows) lane-sparse cleanup for the rest;
    # this keeps lane-dense stores for virtually all of the tensor without a
    # full-tensor pad.
    m_main = (m // k) * k
    parts = []
    if m_main > 0:
        parts.append(_ln_rows_packed_call(x2d[:m_main], weight, bias, eps, k))
    if m_main < m:
        parts.append(_ln_rows_call(x2d[m_main:], weight, bias, eps))
    if len(parts) == 1:
        return parts[0]
    return jnp.concatenate(parts, axis=0)


# ---------------------------------------------------------------------------
# channels_first: normalize over the channel (sublane) axis of (1, C, TN)
# tiles of the NCHW tensor -- no full-tensor HBM transposes.
# ---------------------------------------------------------------------------
def _ln_cfirst_kernel(x_ref, w_ref, b_ref, o_ref, *, eps, inv_c):
    x = x_ref[...].astype(jnp.float32)                 # (1, C, TN)
    mean = jnp.sum(x, axis=1, keepdims=True) * inv_c   # (1, 1, TN)
    xc = x - mean
    var = jnp.sum(xc * xc, axis=1, keepdims=True) * inv_c
    inv = jax.lax.rsqrt(var + eps)                     # (1, 1, TN)
    w = w_ref[...].astype(jnp.float32)                 # (1, C, 1)
    b = b_ref[...].astype(jnp.float32)
    o_ref[...] = (xc * (inv * w) + b).astype(o_ref.dtype)


def _layer_norm_channels_first(x, weight, bias, eps):
    b_dim, c = x.shape[0], x.shape[1]
    hw = 1
    for d in x.shape[2:]:
        hw *= d
    itemsize = x.dtype.itemsize

    if hw < 128:
        # Deep UNet stages (e.g. 7x7 / 8x8 maps): lane width < 128 would force
        # masked partial stores everywhere.  One small transpose and the
        # lane-dense rows kernel (C is typically a multiple of 128 here) wins.
        x3 = x.reshape(b_dim, c, hw)
        xt = jnp.transpose(x3, (0, 2, 1)).reshape(b_dim * hw, c)
        y = _layer_norm_rows(xt, weight, bias, eps)
        y = jnp.transpose(y.reshape(b_dim, hw, c), (0, 2, 1))
        return y.reshape(x.shape)

    x3 = x.reshape(b_dim, c, hw)                       # contiguous -> free reshape
    vmem_limit, block_bytes = _budgets(itemsize)

    # Lane tile: multiple of 128, ~block_bytes per (1, C, TN) block, capped so
    # the hw axis keeps >=4 grid steps when it is large enough.
    tn = max(128, (block_bytes // max(1, c * itemsize)) // 128 * 128)
    if hw >= 4 * 128:
        tn = min(tn, max(128, _round_up(_cdiv(hw, 4), 128)))
    if tn >= hw:
        tn = hw if hw % 128 == 0 else (hw // 128) * 128   # keep blocks lane dense

    w3 = weight.reshape(1, c, 1)
    b3 = bias.reshape(1, c, 1)

    out = pl.pallas_call(
        functools.partial(_ln_cfirst_kernel, eps=eps, inv_c=1.0 / c),
        out_shape=jax.ShapeDtypeStruct((b_dim, c, hw), x.dtype),
        grid_spec=pltpu.PrefetchScalarGridSpec(
            num_scalar_prefetch=0,
            grid=(b_dim, pl.cdiv(hw, tn)),   # masked partial edge block is safe
            in_specs=[
                pl.BlockSpec((1, c, tn), lambda bi, j: (bi, 0, j)),
                pl.BlockSpec((1, c, 1), lambda bi, j: (0, 0, 0)),
                pl.BlockSpec((1, c, 1), lambda bi, j: (0, 0, 0)),
            ],
            out_specs=pl.BlockSpec((1, c, tn), lambda bi, j: (bi, 0, j)),
        ),
        compiler_params=pltpu.CompilerParams(
            dimension_semantics=("parallel", "parallel"),
            vmem_limit_bytes=vmem_limit,
        ),
        cost_estimate=pl.CostEstimate(
            flops=8 * b_dim * c * hw,
            transcendentals=b_dim * hw,
            bytes_accessed=2 * b_dim * c * hw * itemsize,
        ),
    )(x3, w3, b3)
    return out.reshape(x.shape)


# ---------------------------------------------------------------------------
# Public API matching the PyTorch module's forward.
# ---------------------------------------------------------------------------
def layer_norm(x, weight, bias, eps=1e-6, data_format="channels_last"):
    if data_format == "channels_last":
        c = x.shape[-1]
        y = _layer_norm_rows(x.reshape(-1, c), weight, bias, eps)
        return y.reshape(x.shape)
    elif data_format == "channels_first":
        return _layer_norm_channels_first(x, weight, bias, eps)
    else:
        raise NotImplementedError(data_format)


def _reference(x, weight, bias, eps, data_format):
    # Pure-JAX reference for correctness checking.
    if data_format == "channels_last":
        mean = jnp.mean(x, axis=-1, keepdims=True)
        var = jnp.mean((x - mean) ** 2, axis=-1, keepdims=True)
        return (x - mean) / jnp.sqrt(var + eps) * weight + bias
    else:
        u = jnp.mean(x, axis=1, keepdims=True)
        s = jnp.mean((x - u) ** 2, axis=1, keepdims=True)
        xn = (x - u) / jnp.sqrt(s + eps)
        return weight[:, None, None] * xn + bias[:, None, None]


def _check(y, ref, atol=3e-5, rtol=3e-5):
    assert np.allclose(np.asarray(y), np.asarray(ref), atol=atol, rtol=rtol), (
        float(np.max(np.abs(np.asarray(y) - np.asarray(ref)))))


if __name__ == "__main__":
    key = jax.random.PRNGKey(0)
    eps = 1e-6
    k1, k2, k3, k4, k5, k6, k7, k8 = jax.random.split(key, 8)

    # 1) channels_first, NCHW, C=32, hw=256 (sublane-reduce kernel).
    C = 32
    w32 = jax.random.normal(k3, (C,), dtype=jnp.float32)
    b32 = jax.random.normal(k4, (C,), dtype=jnp.float32)
    x_cf = jax.random.normal(k1, (2, C, 16, 16), dtype=jnp.float32)
    y_cf = jax.block_until_ready(
        layer_norm(x_cf, w32, b32, eps, data_format="channels_first"))
    _check(y_cf, _reference(x_cf, w32, b32, eps, "channels_first"))

    # 2) channels_last, NHWC, C=32 (packed MXU path, k=4, m divisible by k).
    x_cl = jax.random.normal(k2, (2, 16, 16, C), dtype=jnp.float32)
    y_cl = jax.block_until_ready(
        layer_norm(x_cl, w32, b32, eps, data_format="channels_last"))
    _check(y_cl, _reference(x_cl, w32, b32, eps, "channels_last"))

    # 3) channels_last, C=96 with awkward B*H*W (packed main + remainder rows).
    C96 = 96
    w96 = jax.random.normal(k5, (C96,), dtype=jnp.float32)
    b96 = jax.random.normal(k6, (C96,), dtype=jnp.float32)
    x96 = jax.random.normal(k7, (2, 5, 7, C96), dtype=jnp.float32)
    y96 = jax.block_until_ready(
        layer_norm(x96, w96, b96, eps, data_format="channels_last"))
    _check(y96, _reference(x96, w96, b96, eps, "channels_last"))

    # 4) channels_first deep stage: C=256, 8x8 map (hw<128 -> transposed route).
    C256 = 256
    w256 = jnp.ones((C256,), dtype=jnp.float32)
    b256 = jnp.zeros((C256,), dtype=jnp.float32)
    x_deep = jax.random.normal(k8, (2, C256, 8, 8), dtype=jnp.float32)
    y_deep = jax.block_until_ready(
        layer_norm(x_deep, w256, b256, eps, data_format="channels_first"))
    _check(y_deep, _reference(x_deep, w256, b256, eps, "channels_first"))

    print("KERNEL_OK")
</pallas_src>

<mosaic_0001>
module attributes {stable_mosaic.version = 11 : i64} {
  func.func @_ln_cfirst_kernel(%arg0: i32, %arg1: i32, %arg2: memref<1x32x256xf32, #tpu.memory_space<vmem>>, %arg3: memref<1x32x1xf32, #tpu.memory_space<vmem>>, %arg4: memref<1x32x1xf32, #tpu.memory_space<vmem>>, %arg5: memref<1x32x256xf32, #tpu.memory_space<vmem>>) attributes {dimension_semantics = [#tpu.dimension_semantics<parallel>, #tpu.dimension_semantics<parallel>], iteration_bounds = array<i64: 2, 1>, scalar_prefetch = 0 : i64, scratch_operands = 0 : i64, tpu.core_type = #tpu.core_type<tc>, window_params = [{transform_indices = @transform_0, window_bounds = array<i64: 1, 32, 256>}, {pipeline_mode = #tpu.pipeline_mode<synchronous>, transform_indices = @transform_1, window_bounds = array<i64: 1, 32, 1>}, {pipeline_mode = #tpu.pipeline_mode<synchronous>, transform_indices = @transform_2, window_bounds = array<i64: 1, 32, 1>}, {transform_indices = @transform_3, window_bounds = array<i64: 1, 32, 256>}]} {
    %c0 = arith.constant 0 : index
    %c0_0 = arith.constant 0 : index
    %c0_1 = arith.constant 0 : index
    %0 = vector.load %arg2[%c0, %c0_0, %c0_1] : memref<1x32x256xf32, #tpu.memory_space<vmem>>, vector<1x32x256xf32>
    %cst = arith.constant dense<0.000000e+00> : vector<1x256xf32>
    %1 = vector.multi_reduction <add>, %0, %cst [1] : vector<1x32x256xf32> to vector<1x256xf32>
    %2 = vector.shape_cast %1 : vector<1x256xf32> to vector<1x1x256xf32>
    %cst_2 = arith.constant 3.125000e-02 : f32
    %3 = vector.broadcast %cst_2 : f32 to vector<1x1x256xf32>
    %4 = arith.mulf %2, %3 : vector<1x1x256xf32>
    %5 = vector.broadcast %4 : vector<1x1x256xf32> to vector<1x32x256xf32>
    %6 = arith.subf %0, %5 : vector<1x32x256xf32>
    %7 = arith.mulf %6, %6 : vector<1x32x256xf32>
    %cst_3 = arith.constant dense<0.000000e+00> : vector<1x256xf32>
    %8 = vector.multi_reduction <add>, %7, %cst_3 [1] : vector<1x32x256xf32> to vector<1x256xf32>
    %9 = vector.shape_cast %8 : vector<1x256xf32> to vector<1x1x256xf32>
    %cst_4 = arith.constant 3.125000e-02 : f32
    %10 = vector.broadcast %cst_4 : f32 to vector<1x1x256xf32>
    %11 = arith.mulf %9, %10 : vector<1x1x256xf32>
    %cst_5 = arith.constant 9.99999997E-7 : f32
    %12 = vector.broadcast %cst_5 : f32 to vector<1x1x256xf32>
    %13 = arith.addf %11, %12 : vector<1x1x256xf32>
    %14 = math.rsqrt %13 : vector<1x1x256xf32>
    %c0_6 = arith.constant 0 : index
    %c0_7 = arith.constant 0 : index
    %c0_8 = arith.constant 0 : index
    %15 = vector.load %arg3[%c0_6, %c0_7, %c0_8] : memref<1x32x1xf32, #tpu.memory_space<vmem>>, vector<1x32x1xf32>
    %c0_9 = arith.constant 0 : index
    %c0_10 = arith.constant 0 : index
    %c0_11 = arith.constant 0 : index
    %16 = vector.load %arg4[%c0_9, %c0_10, %c0_11] : memref<1x32x1xf32, #tpu.memory_space<vmem>>, vector<1x32x1xf32>
    %17 = vector.broadcast %14 : vector<1x1x256xf32> to vector<1x32x256xf32>
    %18 = vector.broadcast %15 : vector<1x32x1xf32> to vector<1x32x256xf32>
    %19 = arith.mulf %17, %18 : vector<1x32x256xf32>
    %20 = arith.mulf %6, %19 : vector<1x32x256xf32>
    %21 = vector.broadcast %16 : vector<1x32x1xf32> to vector<1x32x256xf32>
    %22 = arith.addf %20, %21 : vector<1x32x256xf32>
    %c0_12 = arith.constant 0 : index
    %c0_13 = arith.constant 0 : index
    %c0_14 = arith.constant 0 : index
    %23 = vector.load %arg5[%c0_12, %c0_13, %c0_14] : memref<1x32x256xf32, #tpu.memory_space<vmem>>, vector<1x32x256xf32>
    tpu.vector_store %arg5[%c0_12, %c0_13, %c0_14], %22 {strides = array<i32>} : memref<1x32x256xf32, #tpu.memory_space<vmem>>, vector<1x32x256xf32>,
    return
  }
  func.func @transform_0(%arg0: i32, %arg1: i32) -> (i32, i32, i32) {
    %c0_i32 = arith.constant 0 : i32
    %c0_i32_0 = arith.constant 0 : i32
    return %arg0, %c0_i32, %arg1 : i32, i32, i32
  }
  func.func @transform_1(%arg0: i32, %arg1: i32) -> (i32, i32, i32) {
    %c0_i32 = arith.constant 0 : i32
    %c0_i32_0 = arith.constant 0 : i32
    %c0_i32_1 = arith.constant 0 : i32
    %c0_i32_2 = arith.constant 0 : i32
    return %c0_i32, %c0_i32_0, %c0_i32_1 : i32, i32, i32
  }
  func.func @transform_2(%arg0: i32, %arg1: i32) -> (i32, i32, i32) {
    %c0_i32 = arith.constant 0 : i32
    %c0_i32_0 = arith.constant 0 : i32
    %c0_i32_1 = arith.constant 0 : i32
    %c0_i32_2 = arith.constant 0 : i32
    return %c0_i32, %c0_i32_0, %c0_i32_1 : i32, i32, i32
  }
  func.func @transform_3(%arg0: i32, %arg1: i32) -> (i32, i32, i32) {
    %c0_i32 = arith.constant 0 : i32
    %c0_i32_0 = arith.constant 0 : i32
    return %arg0, %c0_i32, %arg1 : i32, i32, i32
  }
}

</mosaic_0001>

<llo_original>
// kernel: tpu_custom_call.1
$region0: #{tpu_custom_call.1}
  #allocation0 [shape = 'u32[]', space=smem, size = 0x4, offset = 0x4, fixed_abs, tag = 'smem constant byte address 0x4 - core index']
  #allocation1 [shape = 'u32[144,128]{1,0:T(1,128)}', space=vmem, size = 0x12000, scoped, tag = 'internal scratch']
  %s0 = inlined_call_operand.hbm [shape: f32[2,32,256], index: 0, kind: input, shape index: {}]
  %s1 = inlined_call_operand.vmem [shape: f32[1,32,1], index: 1, kind: input, shape index: {}]
  %s2 = inlined_call_operand.vmem [shape: f32[1,32,1], index: 2, kind: input, shape index: {}]
  %s3 = inlined_call_operand.hbm [shape: f32[2,32,256], index: 3, kind: output, shape index: {}]
  %s4 = sld [smem:[#allocation0]]
  $region49: #{tpu_custom_call.1} parent=0
    _
  %s6 = ssub.s32 1, %s4
  %s7 = scalar_select 0, %s6, %s4
  $region1: #{tpu_custom_call.1} parent=0
    #allocation2 [shape = 'u8[65536]{0}', space=vmem, size = 0x10000, scoped, tag = 'input window, operand 0']
    #allocation3 [shape = 's32[2]{0}', space=sflag, size = 0x8, scoped, tag = 'scoped memory for tpu_custom_call.1']
    #allocation4 [shape = 's32[2]{0}', space=sflag, size = 0x8, scoped, tag = 'scoped memory for tpu_custom_call.1']
    #allocation5 [shape = 'u8[65536]{0}', space=vmem, size = 0x10000, scoped, tag = 'output window, operand 0']
    %8 = vsyncpa [#allocation3], 0
    %s9 = scalar_lea.sflag [#allocation3], 1
    %10 = vsyncpa %s9, 0
    %11 = vsyncpa [#allocation4], 0
    %s12 = scalar_lea.sflag [#allocation4], 1
    %13 = vsyncpa %s12, 0
    loop: start=0, step=1, limit=4
    $region2: #{tpu_custom_call.1} parent=1 // loop_pre_header
      _
    $region3: #{tpu_custom_call.1} parent=1 // loop_header
      %s15 = sphi 0, %s19
      %p16 = scmp.ge.s32.totalorder %s15, 4
      %s22 = sphi 0, %s34
      %s23 = sphi 0, %s30
      %s24 = sphi 0, %s22
      %s25 = sphi 0, %s23
      %s26 = sphi 0, %s24
      %s27 = sphi 0, %s25
      %s39 = sphi 0, %s41
      %s42 = sphi 0, %s39
      %s43 = sphi 0, %s42
      %s59 = sphi 0, %s43
      %s63 = sphi 0, %s63
      %s65 = sphi 0, %s63
      %s66 = sphi 0, %s65
      %s80 = sphi 0, %s66
      %s84 = sphi 0, %s84
      %s86 = sphi 0, %s84
      %s87 = sphi 0, %s86
      %s101 = sphi 0, %s87
      %s109 = sphi 0, %s111
      %s112 = sphi 0, %s109
      %s113 = sphi 0, %s112
      %s129 = sphi 0, %s113
    $region4: #{tpu_custom_call.1} parent=1 // loop_header_branch
      %18 = sbr.rel (%p16) target = $region8
    $region5: #{tpu_custom_call.1} parent=1 // loop_body
      %s20 = ssub.s32 %s15, 1
      %s21 = ssub.s32 %s15, 2
      %s28 = sadd.s32 1, %s23
      %p29 = scmp.ge.s32.totalorder %s28, 1
      %s30 = scalar_select %p29, 0, %s28
      %s31 = sadd.s32 1, %s22
      %s32 = scalar_select %p29, %s31, %s22
      %p33 = scmp.ge.s32.totalorder %s32, 2
      %s34 = scalar_select %p33, 0, %s32
      %s35 = ssub.s32 %s22, %s34
      %s36 = ssub.s32 %s23, %s30
      %s37 = sor.u32 %s35, %s36
      %p38 = scmp.eq.s32.totalorder %s37, 0
      %s40 = sadd.s32 %s39, 1
      %s41 = scalar_select %p38, %s39, %s40
      %p44 = pneg %p38
      %p45 = scmp.eq.s32.totalorder %s15, 1
      %p46 = por %p44, %p45
      %p47 = scmp.ne.s32.totalorder %s39, %s42
      %p48 = scmp.eq.s32.totalorder %s15, 0
      %p49 = por %p47, %p48
      %p50 = scmp.ne.s32.totalorder %s39, %s42
      %p51 = scmp.eq.s32.totalorder %s20, 1
      %p52 = por %p50, %p51
      %p53 = scmp.ne.s32.totalorder %s42, %s43
      %p54 = scmp.eq.s32.totalorder %s20, 0
      %p55 = por %p53, %p54
      %p56 = scmp.ne.s32.totalorder %s42, %s43
      %p57 = scmp.eq.s32.totalorder %s21, 1
      %p58 = por %p56, %p57
      %p60 = scmp.ne.s32.totalorder %s43, %s59
      %p61 = scmp.eq.s32.totalorder %s21, 0
      %p62 = por %p60, %p61
      %s64 = sadd.s32 %s63, 1
      %p67 = scmp.eq.s32.totalorder %s15, 1
      %p68 = scmp.ne.s32.totalorder %s63, %s65
      %p69 = scmp.eq.s32.totalorder %s15, 0
      %p70 = por %p68, %p69
      %p71 = scmp.ne.s32.totalorder %s63, %s65
      %p72 = scmp.eq.s32.totalorder %s20, 1
      %p73 = por %p71, %p72
      %p74 = scmp.ne.s32.totalorder %s65, %s66
      %p75 = scmp.eq.s32.totalorder %s20, 0
      %p76 = por %p74, %p75
      %p77 = scmp.ne.s32.totalorder %s65, %s66
      %p78 = scmp.eq.s32.totalorder %s21, 1
      %p79 = por %p77, %p78
      %p81 = scmp.ne.s32.totalorder %s66, %s80
      %p82 = scmp.eq.s32.totalorder %s21, 0
      %p83 = por %p81, %p82
      %s85 = sadd.s32 %s84, 1
      %p88 = scmp.eq.s32.totalorder %s15, 1
      %p89 = scmp.ne.s32.totalorder %s84, %s86
      %p90 = scmp.eq.s32.totalorder %s15, 0
      %p91 = por %p89, %p90
      %p92 = scmp.ne.s32.totalorder %s84, %s86
      %p93 = scmp.eq.s32.totalorder %s20, 1
      %p94 = por %p92, %p93
      %p95 = scmp.ne.s32.totalorder %s86, %s87
      %p96 = scmp.eq.s32.totalorder %s20, 0
      %p97 = por %p95, %p96
      %p98 = scmp.ne.s32.totalorder %s86, %s87
      %p99 = scmp.eq.s32.totalorder %s21, 1
      %p100 = por %p98, %p99
      %p102 = scmp.ne.s32.totalorder %s87, %s101
      %p103 = scmp.eq.s32.totalorder %s21, 0
      %p104 = por %p102, %p103
      %s105 = ssub.s32 %s22, %s34
      %s106 = ssub.s32 %s23, %s30
      %s107 = sor.u32 %s105, %s106
      %p108 = scmp.eq.s32.totalorder %s107, 0
      %s110 = sadd.s32 %s109, 1
      %s111 = scalar_select %p108, %s109, %s110
      %p114 = pneg %p108
      %p115 = scmp.eq.s32.totalorder %s15, 1
      %p116 = por %p114, %p115
      %p117 = scmp.ne.s32.totalorder %s109, %s112
      %p118 = scmp.eq.s32.totalorder %s15, 0
      %p119 = por %p117, %p118
      %p120 = scmp.ne.s32.totalorder %s109, %s112
      %p121 = scmp.eq.s32.totalorder %s20, 1
      %p122 = por %p120, %p121
      %p123 = scmp.ne.s32.totalorder %s112, %s113
      %p124 = scmp.eq.s32.totalorder %s20, 0
      %p125 = por %p123, %p124
      %p126 = scmp.ne.s32.totalorder %s112, %s113
      %p127 = scmp.eq.s32.totalorder %s21, 1
      %p128 = por %p126, %p127
      %p130 = scmp.ne.s32.totalorder %s113, %s129
      %p131 = scmp.eq.s32.totalorder %s21, 0
      %p132 = por %p130, %p131
      %p133 = scmp.le.s32.totalorder 1, %s15
      %p134 = scmp.lt.s32.totalorder %s15, 3
      %p135 = pnand %p133, %p134
      %p136 = pneg %p135
      // Predicated region
      $region9: #{tpu_custom_call.1} parent=5 // pred_check
        _
      $region10: #{tpu_custom_call.1} parent=5 // pred_check_branch
        %138 = sbr.rel (%p135) target = $region12
      $region11: #{tpu_custom_call.1} parent=5 // pred_region
        %s139 = ssub.s32 %s15, 1
        // Predicated region
        $region13: #{tpu_custom_call.1} parent=11 // pred_check
          %p140 = pneg %p76
        $region14: #{tpu_custom_call.1} parent=11 // pred_check_branch
          %142 = sbr.rel (%p140) target = $region16
        $region15: #{tpu_custom_call.1} parent=11 // pred_region
          _
        $region16: #{tpu_custom_call.1} parent=11 // pred_fallthru
          _
        // Predicated region
        $region17: #{tpu_custom_call.1} parent=11 // pred_check
          %p143 = pneg %p97
        $region18: #{tpu_custom_call.1} parent=11 // pred_check_branch
          %145 = sbr.rel (%p143) target = $region20
        $region19: #{tpu_custom_call.1} parent=11 // pred_region
          _
        $region20: #{tpu_custom_call.1} parent=11 // pred_fallthru
          _
      $region12: #{tpu_custom_call.1} parent=5 // pred_fallthru
        _
      %p146 = scmp.lt.s32.totalorder %s15, 2
      // Predicated region
      $region21: #{tpu_custom_call.1} parent=5 // pred_check
        %p147 = pneg %p146
      $region22: #{tpu_custom_call.1} parent=5 // pred_check_branch
        %149 = sbr.rel (%p147) target = $region24
      $region23: #{tpu_custom_call.1} parent=5 // pred_region
        // Predicated region
        $region25: #{tpu_custom_call.1} parent=23 // pred_check
          %p150 = pneg %p49
        $region26: #{tpu_custom_call.1} parent=23 // pred_check_branch
          %152 = sbr.rel (%p150) target = $region28
        $region27: #{tpu_custom_call.1} parent=23 // pred_region
          %s153 = sand.u32 %s39, 1
          %s154 = scalar_lea.sflag [#allocation3], %s153
          %s155 = sand.u32 %s39, 1
          %s156 = smul.addr %s155, 64
          %s157 = scalar_lea.vmem [#allocation2], %s156
          %s158 = smul.u32 2, %s23
          %s160 = ssub.s32 1024, 1024
          %161 = vsyncadd %s154, %s160
          %s162 = smul.addr %s22, 8
          %s163 = sadd.s32 %s158, %s162
          %s164 = smul.addr %s163, 128
          %s165 = scalar_lea.hbm %s0, %s164
          %s166 = sshll.u32 %s157, 4
          %s167 = int_to_ptr.vmem [resolvable:$true] %s166
          %172 = dma.hbm_to_vmem [thread:$0]  %s165, 1024, %s167, %s154, 256, 256, 16
        $region28: #{tpu_custom_call.1} parent=23 // pred_fallthru
          _
      $region24: #{tpu_custom_call.1} parent=5 // pred_fallthru
        _
      %p173 = scmp.le.s32.totalorder 1, %s15
      %p174 = scmp.lt.s32.totalorder %s15, 3
      %p175 = pnand %p173, %p174
      %p176 = pneg %p175
      // Predicated region
      $region29: #{tpu_custom_call.1} parent=5 // pred_check
        _
      $region30: #{tpu_custom_call.1} parent=5 // pred_check_branch
        %178 = sbr.rel (%p175) target = $region32
      $region31: #{tpu_custom_call.1} parent=5 // pred_region
        %s179 = ssub.s32 %s15, 1
        %s180 = sand.u32 %s42, 1
        %s181 = scalar_lea.sflag [#allocation3], %s180
        %s182 = sand.u32 %s42, 1
        %s183 = smul.addr %s182, 64
        %s184 = scalar_lea.vmem [#allocation2], %s183
        // Predicated region
        $region33: #{tpu_custom_call.1} parent=31 // pred_check
          %p185 = pneg %p55
        $region34: #{tpu_custom_call.1} parent=31 // pred_check_branch
          %187 = sbr.rel (%p185) target = $region36
        $region35: #{tpu_custom_call.1} parent=31 // pred_region
          %188 = dma.done %s181, 1024
        $region36: #{tpu_custom_call.1} parent=31 // pred_fallthru
          _
        %s189 = sand.u32 %s42, 1
        %s190 = scalar_lea.sflag [#allocation3], %s189
        %s191 = sand.u32 %s42, 1
        %s192 = smul.addr %s191, 64
        %s193 = scalar_lea.vmem [#allocation2], %s192
        %p194 = pneg %p55
        %p195 = pneg %p52
        %p196 = pneg %p76
        %p197 = pneg %p73
        %p198 = pneg %p97
        %p199 = pneg %p94
        %p200 = pneg %p125
        %p201 = pneg %p122
        %s202 = sand.u32 %s112, 1
        %s203 = scalar_lea.sflag [#allocation4], %s202
        %s204 = sand.u32 %s112, 1
        %s205 = smul.addr %s204, 64
        %s206 = scalar_lea.vmem [#allocation5], %s205
        %s207 = smul.u32 2, %s25
        %s208 = smul.u32 2, %s25
        %v209 = vld [vmem:[%s184] sm:$0xff]
        %v210 = vld [vmem:[%s184 + $0x8] sm:$0xff]
        %v211 = vld [vmem:[%s184 + $0x10] sm:$0xff]
        %v212 = vld [vmem:[%s184 + $0x18] sm:$0xff]
        %v213 = vld [vmem:[%s184 + $0x20] sm:$0xff]
        %v214 = vld [vmem:[%s184 + $0x28] sm:$0xff]
        %v215 = vld [vmem:[%s184 + $0x30] sm:$0xff]
        %v216 = vld [vmem:[%s184 + $0x38] sm:$0xff]
        %v217 = vadd.f32 %v209, %v211
        %v218 = vadd.f32 %v217, %v213
        %v219 = vadd.f32 %v218, %v215
        %v220 = vrot.slane %v219, 4
        %v221 = vadd.f32 %v219, %v220
        %v222 = vrot.slane %v221, 2
        %v223 = vadd.f32 %v221, %v222
        %v224 = vrot.slane %v223, 1
        %v225 = vadd.f32 %v223, %v224
        %v226 = vadd.f32 %v210, %v212
        %v227 = vadd.f32 %v226, %v214
        %v228 = vadd.f32 %v227, %v216
        %v229 = vrot.slane %v228, 4
        %v230 = vadd.f32 %v228, %v229
        %v231 = vrot.slane %v230, 2
        %v232 = vadd.f32 %v230, %v231
        %v233 = vrot.slane %v232, 1
        %v234 = vadd.f32 %v232, %v233
        %v235 = vmul.f32 %v225, 0.03125
        %v236 = vmul.f32 %v234, 0.03125
        %v237 = vsub.f32 %v209, %v235
        %v238 = vsub.f32 %v210, %v236
        %v239 = vsub.f32 %v211, %v235
        %v240 = vsub.f32 %v212, %v236
        %v241 = vsub.f32 %v213, %v235
        %v242 = vsub.f32 %v214, %v236
        %v243 = vsub.f32 %v215, %v235
        %v244 = vsub.f32 %v216, %v236
        %v245 = vmul.f32 %v237, %v237
        %v246 = vmul.f32 %v238, %v238
        %v247 = vmul.f32 %v239, %v239
        %v248 = vmul.f32 %v240, %v240
        %v249 = vmul.f32 %v241, %v241
        %v250 = vmul.f32 %v242, %v242
        %v251 = vmul.f32 %v243, %v243
        %v252 = vmul.f32 %v244, %v244
        %v253 = vadd.f32 %v245, %v247
        %v254 = vadd.f32 %v253, %v249
        %v255 = vadd.f32 %v254, %v251
        %v256 = vrot.slane %v255, 4
        %v257 = vadd.f32 %v255, %v256
        %v258 = vrot.slane %v257, 2
        %v259 = vadd.f32 %v257, %v258
        %v260 = vrot.slane %v259, 1
        %v261 = vadd.f32 %v259, %v260
        %v262 = vadd.f32 %v246, %v248
        %v263 = vadd.f32 %v262, %v250
        %v264 = vadd.f32 %v263, %v252
        %v265 = vrot.slane %v264, 4
        %v266 = vadd.f32 %v264, %v265
        %v267 = vrot.slane %v266, 2
        %v268 = vadd.f32 %v266, %v267
        %v269 = vrot.slane %v268, 1
        %v270 = vadd.f32 %v268, %v269
        %v271 = vmul.f32 %v261, 0.03125
        %v272 = vmul.f32 %v270, 0.03125
        %v273 = vadd.f32 %v271, 1e-06
        %v274 = vadd.f32 %v272, 1e-06
        %v275 = vrsqrt.pop %v273
        %v276 = vrsqrt.pop %v274
        %v277 = vld [vmem:[%s1] sm:$0xff]
        %v278 = vld [vmem:[%s1 + $0x8] sm:$0xff]
        %v279 = vld [vmem:[%s1 + $0x10] sm:$0xff]
        %v280 = vld [vmem:[%s1 + $0x18] sm:$0xff]
        %v281 = vld [vmem:[%s2] sm:$0xff]
        %v282 = vld [vmem:[%s2 + $0x8] sm:$0xff]
        %v283 = vld [vmem:[%s2 + $0x10] sm:$0xff]
        %v284 = vld [vmem:[%s2 + $0x18] sm:$0xff]
        %286 = vset.pattern.permute.xlu0 0
        %287 = vperm.xlu0 %286, %v277
        %v288 = vpop.permute.xlu0 %287
        %291 = vset.pattern.permute.xlu0 0
        %292 = vperm.xlu0 %291, %v278
        %v293 = vpop.permute.xlu0 %292
        %296 = vset.pattern.permute.xlu0 0
        %297 = vperm.xlu0 %296, %v279
        %v298 = vpop.permute.xlu0 %297
        %301 = vset.pattern.permute.xlu0 0
        %302 = vperm.xlu0 %301, %v280
        %v303 = vpop.permute.xlu0 %302
        %v305 = vmul.f32 %v275, %v288
        %v306 = vmul.f32 %v276, %v288
        %v307 = vmul.f32 %v275, %v293
        %v308 = vmul.f32 %v276, %v293
        %v309 = vmul.f32 %v275, %v298
        %v310 = vmul.f32 %v276, %v298
        %v311 = vmul.f32 %v275, %v303
        %v312 = vmul.f32 %v276, %v303
        %v313 = vmul.f32 %v237, %v305
        %v314 = vmul.f32 %v238, %v306
        %v315 = vmul.f32 %v239, %v307
        %v316 = vmul.f32 %v240, %v308
        %v317 = vmul.f32 %v241, %v309
        %v318 = vmul.f32 %v242, %v310
        %v319 = vmul.f32 %v243, %v311
        %v320 = vmul.f32 %v244, %v312
        %322 = vset.pattern.permute.xlu0 0
        %323 = vperm.xlu0 %322, %v281
        %v324 = vpop.permute.xlu0 %323
        %327 = vset.pattern.permute.xlu0 0
        %328 = vperm.xlu0 %327, %v282
        %v329 = vpop.permute.xlu0 %328
        %332 = vset.pattern.permute.xlu0 0
        %333 = vperm.xlu0 %332, %v283
        %v334 = vpop.permute.xlu0 %333
        %337 = vset.pattern.permute.xlu0 0
        %338 = vperm.xlu0 %337, %v284
        %v339 = vpop.permute.xlu0 %338
        %v341 = vadd.f32 %v313, %v324
        %v342 = vadd.f32 %v314, %v324
        %v343 = vadd.f32 %v315, %v329
        %v344 = vadd.f32 %v316, %v329
        %v345 = vadd.f32 %v317, %v334
        %v346 = vadd.f32 %v318, %v334
        %v347 = vadd.f32 %v319, %v339
        %v348 = vadd.f32 %v320, %v339
        %349 = vst [vmem:[%s206] sm:$0xff] %v341
        %350 = vst [vmem:[%s206 + $0x8] sm:$0xff] %v342
        %351 = vst [vmem:[%s206 + $0x10] sm:$0xff] %v343
        %352 = vst [vmem:[%s206 + $0x18] sm:$0xff] %v344
        %353 = vst [vmem:[%s206 + $0x20] sm:$0xff] %v345
        %354 = vst [vmem:[%s206 + $0x28] sm:$0xff] %v346
        %355 = vst [vmem:[%s206 + $0x30] sm:$0xff] %v347
        %356 = vst [vmem:[%s206 + $0x38] sm:$0xff] %v348
        %s357 = sand.u32 %s112, 1
        %s358 = scalar_lea.sflag [#allocation4], %s357
        %s359 = sand.u32 %s112, 1
        %s360 = smul.addr %s359, 64
        %s361 = scalar_lea.vmem [#allocation5], %s360
        // Predicated region
        $region37: #{tpu_custom_call.1} parent=31 // pred_check
          %p362 = pneg %p122
        $region38: #{tpu_custom_call.1} parent=31 // pred_check_branch
          %364 = sbr.rel (%p362) target = $region40
        $region39: #{tpu_custom_call.1} parent=31 // pred_region
          %s365 = smul.u32 2, %s25
          %s367 = ssub.s32 1024, 1024
          %368 = vsyncadd %s358, %s367
          %s369 = smul.addr %s24, 8
          %s370 = sadd.s32 %s365, %s369
          %s371 = smul.addr %s370, 128
          %s372 = scalar_lea.hbm %s3, %s371
          %s373 = sshll.u32 %s361, 4
          %s374 = int_to_ptr.vmem [resolvable:$true] %s373
          %379 = dma.vmem_to_hbm [thread:$0]  %s374, 1024, %s372, %s358, 256, 256, 16
        $region40: #{tpu_custom_call.1} parent=31 // pred_fallthru
          _
      $region32: #{tpu_custom_call.1} parent=5 // pred_fallthru
        _
      %p380 = scmp.le.s32.totalorder 2, %s15
      // Predicated region
      $region41: #{tpu_custom_call.1} parent=5 // pred_check
        %p381 = pneg %p380
      $region42: #{tpu_custom_call.1} parent=5 // pred_check_branch
        %383 = sbr.rel (%p381) target = $region44
      $region43: #{tpu_custom_call.1} parent=5 // pred_region
        %s384 = ssub.s32 %s15, 2
        // Predicated region
        $region45: #{tpu_custom_call.1} parent=43 // pred_check
          %p385 = pneg %p128
        $region46: #{tpu_custom_call.1} parent=43 // pred_check_branch
          %387 = sbr.rel (%p385) target = $region48
        $region47: #{tpu_custom_call.1} parent=43 // pred_region
          %s388 = sand.u32 %s113, 1
          %s389 = scalar_lea.sflag [#allocation4], %s388
          %s390 = sand.u32 %s113, 1
          %s391 = smul.addr %s390, 64
          %s392 = scalar_lea.vmem [#allocation5], %s391
          %393 = dma.done %s389, 1024
        $region48: #{tpu_custom_call.1} parent=43 // pred_fallthru
          _
      $region44: #{tpu_custom_call.1} parent=5 // pred_fallthru
        _
    $region6: #{tpu_custom_call.1} parent=1 // loop_footer
      %s19 = sadd.s32 1, %s15
    $region7: #{tpu_custom_call.1} parent=1 // loop_footer_branch
      %14 = sbr.rel target = $region3
    $region8: #{tpu_custom_call.1} parent=1 // loop_exit
      _
    %394 = vsyncpa [#allocation3], 1
    %s395 = scalar_lea.sflag [#allocation3], 1
    %396 = vsyncpa %s395, 1
    %397 = vsyncpa [#allocation4], 1
    %s398 = scalar_lea.sflag [#allocation4], 1
    %399 = vsyncpa %s398, 1

</llo_original>
